<compile_context>
chip_gen: v7x
topology: tpu7x:2x2x1
jax: 0.10.0
libtpu: 0.0.40
codegen_flags: <defaults>
</compile_context>

<pallas_src>
import functools

import jax
import jax.numpy as jnp
from jax.experimental import pallas as pl
from jax.experimental.pallas import tpu as pltpu

LAYERS = [[16, 32], [32, 16], [16, 8]]
EMB_DIM = 8


def _round_up(x: int, m: int) -> int:
    return ((x + m - 1) // m) * m


def _fpnet_kernel(ids_ref,   # [2, TM] int32: row 0 = user row id, row 1 = item row id + n_user_rows
                  a_ref,     # [32, Vp] f32: W1^T @ blockdiag(user_emb^T, item_emb^T)
                  w_ref,     # [32, 36] f32 packed slab: W2^T, W3^T, Wo^T and b1, b2, b3, bo
                  o_ref,     # [1, TM] f32 output (sigmoid rating), batch on lanes
                  *, mm_dtype):
    vp = a_ref.shape[1]
    tm = ids_ref.shape[1]

    uid = ids_ref[0:1, :]                    # [1, TM]
    iid = ids_ref[1:2, :]                    # [1, TM] (already offset into combined vocab)

    # Single combined one-hot over the block-diagonal embedding vocabulary.
    # Exact: each column selects one user row and one item row of A.
    # TODO(synk): for large vocabularies (tables not VMEM-resident) replace the one-hot
    # gather with a scalar-prefetch / manual-DMA gather. Out-of-range ids give a zero
    # embedding here, whereas jnp.take / torch.Embedding would clamp / index differently.
    row = jax.lax.broadcasted_iota(jnp.int32, (vp, tm), 0)
    onehot = ((row == uid) | (row == iid)).astype(mm_dtype)          # [Vp, TM]

    # Static slices of the packed parameter slab (VMEM-resident across the grid).
    a  = a_ref[...].astype(mm_dtype)                                  # [32, Vp]
    w2 = w_ref[0:16, 0:32].astype(mm_dtype)                           # [16, 32]
    w3 = w_ref[16:24, 0:16].astype(mm_dtype)                          # [8, 16]
    wo = w_ref[24:25, 0:8].astype(mm_dtype)                           # [1, 8]
    b1 = w_ref[0:32, 32:33]                                           # [32, 1]
    b2 = w_ref[0:16, 33:34]                                           # [16, 1]
    b3 = w_ref[0:8, 34:35]                                            # [8, 1]
    bo = w_ref[0:1, 35:36]                                            # [1, 1]

    # Fused embedding-gather + layer 1 (single MXU matmul), then the rest of the MLP.
    # Elementwise math (bias add / ReLU / sigmoid) stays in f32 on every generation.
    h = jnp.maximum(jnp.dot(a, onehot, preferred_element_type=jnp.float32) + b1, 0.0)   # [32, TM]
    h = jnp.maximum(jnp.dot(w2, h.astype(mm_dtype),
                            preferred_element_type=jnp.float32) + b2, 0.0)              # [16, TM]
    h = jnp.maximum(jnp.dot(w3, h.astype(mm_dtype),
                            preferred_element_type=jnp.float32) + b3, 0.0)              # [8, TM]
    logit = jnp.dot(wo, h.astype(mm_dtype),
                    preferred_element_type=jnp.float32) + bo                            # [1, TM]
    o_ref[...] = jax.nn.sigmoid(logit)


def fpnet_forward(user_ids, item_ids, user_emb, item_emb, mlp_params, *,
                  tm=4096, matmul_dtype=jnp.float32):
    """FPNet forward: integer ids -> rating in [0, 1], shape [B, 1].

    tm: batch-tile upper bound (multiple of 128). Sweep 2048-8192 on v6e/v7x;
        prefer 2048-4096 on v5e (single vector-store slot, watch [32,TM] spills).
    matmul_dtype: set to jnp.bfloat16 on v6e/v7x for fewer MXU passes (requires
        loosening the f32 parity tolerance); default f32 keeps exactness.
    """
    B = int(user_ids.shape[0])

    # ---- Batch tiling: large TM to amortize per-step overhead, but keep >= 2 grid
    # steps when the batch allows it so both v7x TensorCores get work.
    half = _round_up(max((B + 1) // 2, 1), 128)
    TM = max(128, min(tm, half, _round_up(B, 128)))
    num_tiles = -(-B // TM)
    Bp = num_tiles * TM
    pad = Bp - B

    n_user_rows = user_emb.shape[0]          # n_users + 1
    n_item_rows = item_emb.shape[0]          # n_items + 1
    V = n_user_rows + n_item_rows
    Vp = _round_up(V, 8)                     # sublane-friendly one-hot height

    # ---- Pack ids into one [2, Bp] strip; item ids pre-offset into the combined vocab.
    uid = user_ids.astype(jnp.int32)
    iid = item_ids.astype(jnp.int32) + n_user_rows
    ids = jnp.stack([uid, iid], axis=0)
    ids = jnp.pad(ids, ((0, 0), (0, pad)))   # pad with id 0 (valid row); outputs sliced off

    # ---- Fold embedding tables into layer 1:  A = W1^T @ blockdiag(Eu^T, Ei^T).
    (w1, b1), (w2, b2), (w3, b3), (wo, bo) = mlp_params
    E = jnp.zeros((LAYERS[0][0], Vp), jnp.float32)
    E = E.at[0:EMB_DIM, 0:n_user_rows].set(user_emb.T)
    E = E.at[EMB_DIM:2 * EMB_DIM, n_user_rows:V].set(item_emb.T)
    A = jnp.dot(w1.T, E, precision=jax.lax.Precision.HIGHEST)        # [32, Vp]

    # ---- Pack remaining tiny weights + all biases into one [32, 36] slab.
    wslab = jnp.zeros((32, 36), jnp.float32)
    wslab = wslab.at[0:16, 0:32].set(w2.T)       # W2^T
    wslab = wslab.at[16:24, 0:16].set(w3.T)      # W3^T
    wslab = wslab.at[24:25, 0:8].set(wo.T)       # Wo^T
    wslab = wslab.at[0:32, 32:33].set(b1.T)      # b1
    wslab = wslab.at[0:16, 33:34].set(b2.T)      # b2
    wslab = wslab.at[0:8, 34:35].set(b3.T)       # b3
    wslab = wslab.at[0:1, 35:36].set(bo.T)       # bo

    def resident(arr):
        # Full block, same index every grid step -> stays resident in VMEM.
        return pl.BlockSpec(arr.shape, lambda i: (0, 0))

    # VMEM footprint per step (ids + out double-buffered + params + intermediates) is
    # well under the 32 MiB scoped default on every generation (incl. v7x's 64 MiB part),
    # so no vmem_limit_bytes override and no deeper Buffered pipeline are needed.
    out = pl.pallas_call(
        functools.partial(_fpnet_kernel, mm_dtype=matmul_dtype),
        out_shape=jax.ShapeDtypeStruct((1, Bp), jnp.float32),
        grid=(num_tiles,),
        in_specs=[pl.BlockSpec((2, TM), lambda i: (0, i)),
                  resident(A),
                  resident(wslab)],
        out_specs=pl.BlockSpec((1, TM), lambda i: (0, i)),
        compiler_params=pltpu.CompilerParams(
            dimension_semantics=("parallel",)),   # megacore sharding on v7x
    )(ids, A, wslab)

    return out[0, :B].reshape(B, 1)


def init_params(key, n_users, n_items):
    """Deterministic synthetic parameters matching the PyTorch module shapes."""
    ks = jax.random.split(key, 12)
    user_emb = jax.random.normal(ks[0], (n_users + 1, EMB_DIM), jnp.float32) * 0.1
    item_emb = jax.random.normal(ks[1], (n_items + 1, EMB_DIM), jnp.float32) * 0.1

    def linear(kw, kb, fan_in, fan_out):
        bound = 1.0 / jnp.sqrt(fan_in)
        w = jax.random.uniform(kw, (fan_in, fan_out), jnp.float32, -bound, bound)
        b = jax.random.uniform(kb, (1, fan_out), jnp.float32, -bound, bound)
        return w, b

    w1, b1 = linear(ks[2], ks[3], LAYERS[0][0], LAYERS[0][1])
    w2, b2 = linear(ks[4], ks[5], LAYERS[1][0], LAYERS[1][1])
    w3, b3 = linear(ks[6], ks[7], LAYERS[2][0], LAYERS[2][1])
    wo, bo = linear(ks[8], ks[9], LAYERS[2][1], 1)

    return user_emb, item_emb, ((w1, b1), (w2, b2), (w3, b3), (wo, bo))


def fpnet_reference(user_ids, item_ids, user_emb, item_emb, mlp_params):
    ue = jnp.take(user_emb, user_ids, axis=0)
    ie = jnp.take(item_emb, item_ids, axis=0)
    x = jnp.concatenate([ue, ie], axis=1)
    for (w, b) in mlp_params[:-1]:
        x = jnp.maximum(x @ w + b, 0.0)
    wo, bo = mlp_params[-1]
    return jax.nn.sigmoid(x @ wo + bo)


if __name__ == "__main__":
    n_users, n_items, batch = 10, 12, 8

    key = jax.random.PRNGKey(0)
    k_ids_u, k_ids_i, k_params = jax.random.split(key, 3)

    user_emb, item_emb, mlp_params = init_params(k_params, n_users, n_items)

    user_ids = jax.random.randint(k_ids_u, (batch,), 0, n_users + 1, jnp.int32)
    item_ids = jax.random.randint(k_ids_i, (batch,), 0, n_items + 1, jnp.int32)

    rating = fpnet_forward(user_ids, item_ids, user_emb, item_emb, mlp_params)
    rating = jax.block_until_ready(rating)

    ref = fpnet_reference(user_ids, item_ids, user_emb, item_emb, mlp_params)
    assert rating.shape == (batch, 1)
    assert jnp.allclose(rating, ref, atol=1e-5, rtol=1e-5)

    print("KERNEL_OK")
</pallas_src>

<mosaic_0001>
module attributes {stable_mosaic.version = 11 : i64} {
  func.func @_fpnet_kernel(%arg0: i32, %arg1: memref<2x128xi32, #tpu.memory_space<vmem>>, %arg2: memref<32x24xf32, #tpu.memory_space<vmem>>, %arg3: memref<32x36xf32, #tpu.memory_space<vmem>>, %arg4: memref<1x128xf32, #tpu.memory_space<vmem>>) attributes {dimension_semantics = [#tpu.dimension_semantics<parallel>], iteration_bounds = array<i64: 1>, scalar_prefetch = 0 : i64, scratch_operands = 0 : i64, tpu.core_type = #tpu.core_type<tc>, window_params = [{transform_indices = @transform_0, window_bounds = array<i64: 2, 128>}, {pipeline_mode = #tpu.pipeline_mode<synchronous>, transform_indices = @transform_1, window_bounds = array<i64: 32, 24>}, {pipeline_mode = #tpu.pipeline_mode<synchronous>, transform_indices = @transform_2, window_bounds = array<i64: 32, 36>}, {transform_indices = @transform_3, window_bounds = array<i64: 1, 128>}]} {
    %c0 = arith.constant 0 : index
    %c0_0 = arith.constant 0 : index
    %0 = vector.load %arg1[%c0, %c0_0] : memref<2x128xi32, #tpu.memory_space<vmem>>, vector<1x128xi32>
    %c1 = arith.constant 1 : index
    %c0_1 = arith.constant 0 : index
    %1 = vector.load %arg1[%c1, %c0_1] : memref<2x128xi32, #tpu.memory_space<vmem>>, vector<1x128xi32>
    %2 = tpu.iota {dimensions = array<i32: 0>} : vector<24x128xi32>
    %3 = vector.broadcast %0 : vector<1x128xi32> to vector<24x128xi32>
    %4 = arith.cmpi eq, %2, %3 : vector<24x128xi32>
    %5 = vector.broadcast %1 : vector<1x128xi32> to vector<24x128xi32>
    %6 = arith.cmpi eq, %2, %5 : vector<24x128xi32>
    %7 = arith.ori %4, %6 : vector<24x128xi1>
    %8 = arith.extui %7 : vector<24x128xi1> to vector<24x128xi32>
    %9 = arith.sitofp %8 : vector<24x128xi32> to vector<24x128xf32>
    %c0_2 = arith.constant 0 : index
    %c0_3 = arith.constant 0 : index
    %10 = vector.load %arg2[%c0_2, %c0_3] : memref<32x24xf32, #tpu.memory_space<vmem>>, vector<32x24xf32>
    %c0_4 = arith.constant 0 : index
    %c0_5 = arith.constant 0 : index
    %11 = vector.load %arg3[%c0_4, %c0_5] : memref<32x36xf32, #tpu.memory_space<vmem>>, vector<16x32xf32>
    %c16 = arith.constant 16 : index
    %c0_6 = arith.constant 0 : index
    %12 = vector.load %arg3[%c16, %c0_6] : memref<32x36xf32, #tpu.memory_space<vmem>>, vector<8x16xf32>
    %c24 = arith.constant 24 : index
    %c0_7 = arith.constant 0 : index
    %13 = vector.load %arg3[%c24, %c0_7] : memref<32x36xf32, #tpu.memory_space<vmem>>, vector<1x8xf32>
    %c0_8 = arith.constant 0 : index
    %c32 = arith.constant 32 : index
    %14 = vector.load %arg3[%c0_8, %c32] : memref<32x36xf32, #tpu.memory_space<vmem>>, vector<32x1xf32>
    %c0_9 = arith.constant 0 : index
    %c33 = arith.constant 33 : index
    %15 = vector.load %arg3[%c0_9, %c33] : memref<32x36xf32, #tpu.memory_space<vmem>>, vector<16x1xf32>
    %c0_10 = arith.constant 0 : index
    %c34 = arith.constant 34 : index
    %16 = vector.load %arg3[%c0_10, %c34] : memref<32x36xf32, #tpu.memory_space<vmem>>, vector<8x1xf32>
    %c0_11 = arith.constant 0 : index
    %c35 = arith.constant 35 : index
    %17 = vector.load %arg3[%c0_11, %c35] : memref<32x36xf32, #tpu.memory_space<vmem>>, vector<1x1xf32>
    %cst = arith.constant dense<0.000000e+00> : vector<32x128xf32>
    %18 = tpu.matmul %10, %9, %cst {dimension_numbers = #tpu.dot_dimension_numbers<[1], [0], [0], [1], [0, 0, 1, 1], [], []>} : vector<32x24xf32>, vector<24x128xf32>, vector<32x128xf32> -> vector<32x128xf32>
    %19 = vector.broadcast %14 : vector<32x1xf32> to vector<32x128xf32>
    %20 = arith.addf %18, %19 : vector<32x128xf32>
    %cst_12 = arith.constant 0.000000e+00 : f32
    %21 = vector.broadcast %cst_12 : f32 to vector<32x128xf32>
    %22 = arith.maximumf %20, %21 : vector<32x128xf32>
    %cst_13 = arith.constant dense<0.000000e+00> : vector<16x128xf32>
    %23 = tpu.matmul %11, %22, %cst_13 {dimension_numbers = #tpu.dot_dimension_numbers<[1], [0], [0], [1], [0, 0, 1, 1], [], []>} : vector<16x32xf32>, vector<32x128xf32>, vector<16x128xf32> -> vector<16x128xf32>
    %24 = vector.broadcast %15 : vector<16x1xf32> to vector<16x128xf32>
    %25 = arith.addf %23, %24 : vector<16x128xf32>
    %cst_14 = arith.constant 0.000000e+00 : f32
    %26 = vector.broadcast %cst_14 : f32 to vector<16x128xf32>
    %27 = arith.maximumf %25, %26 : vector<16x128xf32>
    %cst_15 = arith.constant dense<0.000000e+00> : vector<8x128xf32>
    %28 = tpu.matmul %12, %27, %cst_15 {dimension_numbers = #tpu.dot_dimension_numbers<[1], [0], [0], [1], [0, 0, 1, 1], [], []>} : vector<8x16xf32>, vector<16x128xf32>, vector<8x128xf32> -> vector<8x128xf32>
    %29 = vector.broadcast %16 : vector<8x1xf32> to vector<8x128xf32>
    %30 = arith.addf %28, %29 : vector<8x128xf32>
    %cst_16 = arith.constant 0.000000e+00 : f32
    %31 = vector.broadcast %cst_16 : f32 to vector<8x128xf32>
    %32 = arith.maximumf %30, %31 : vector<8x128xf32>
    %cst_17 = arith.constant dense<0.000000e+00> : vector<1x128xf32>
    %33 = tpu.matmul %13, %32, %cst_17 {dimension_numbers = #tpu.dot_dimension_numbers<[1], [0], [0], [1], [0, 0, 1, 1], [], []>} : vector<1x8xf32>, vector<8x128xf32>, vector<1x128xf32> -> vector<1x128xf32>
    %34 = vector.broadcast %17 : vector<1x1xf32> to vector<1x128xf32>
    %35 = arith.addf %33, %34 : vector<1x128xf32>
    %36 = arith.negf %35 : vector<1x128xf32>
    %37 = math.exp %36 : vector<1x128xf32>
    %cst_18 = arith.constant 1.000000e+00 : f32
    %38 = vector.broadcast %cst_18 : f32 to vector<1x128xf32>
    %39 = arith.addf %38, %37 : vector<1x128xf32>
    %40 = arith.divf %38, %39 : vector<1x128xf32>
    %c0_19 = arith.constant 0 : index
    %c0_20 = arith.constant 0 : index
    %41 = vector.load %arg4[%c0_19, %c0_20] : memref<1x128xf32, #tpu.memory_space<vmem>>, vector<1x128xf32>
    tpu.vector_store %arg4[%c0_19, %c0_20], %40 {strides = array<i32>} : memref<1x128xf32, #tpu.memory_space<vmem>>, vector<1x128xf32>,
    return
  }
  func.func @transform_0(%arg0: i32) -> (i32, i32) {
    %c0_i32 = arith.constant 0 : i32
    %c0_i32_0 = arith.constant 0 : i32
    return %c0_i32, %arg0 : i32, i32
  }
  func.func @transform_1(%arg0: i32) -> (i32, i32) {
    %c0_i32 = arith.constant 0 : i32
    %c0_i32_0 = arith.constant 0 : i32
    %c0_i32_1 = arith.constant 0 : i32
    return %c0_i32, %c0_i32_0 : i32, i32
  }
  func.func @transform_2(%arg0: i32) -> (i32, i32) {
    %c0_i32 = arith.constant 0 : i32
    %c0_i32_0 = arith.constant 0 : i32
    %c0_i32_1 = arith.constant 0 : i32
    return %c0_i32, %c0_i32_0 : i32, i32
  }
  func.func @transform_3(%arg0: i32) -> (i32, i32) {
    %c0_i32 = arith.constant 0 : i32
    %c0_i32_0 = arith.constant 0 : i32
    return %c0_i32, %arg0 : i32, i32
  }
}

</mosaic_0001>

<llo_original>
// kernel: tpu_custom_call.1
$region0: #{tpu_custom_call.1}
  #allocation0 [shape = 'u32[]', space=smem, size = 0x4, offset = 0x4, fixed_abs, tag = 'smem constant byte address 0x4 - core index']
  #allocation1 [shape = 'u32[144,128]{1,0:T(1,128)}', space=vmem, size = 0x12000, scoped, tag = 'internal scratch']
  %s0 = inlined_call_operand.vmem [shape: s32[2,128], index: 0, kind: input, shape index: {}]
  %s1 = inlined_call_operand.vmem [shape: f32[32,24], index: 1, kind: input, shape index: {}]
  %s2 = inlined_call_operand.vmem [shape: f32[32,36], index: 2, kind: input, shape index: {}]
  %s3 = inlined_call_operand.hbm [shape: f32[1,128], index: 3, kind: output, shape index: {}]
  %s4 = sld [smem:[#allocation0]]
  $region22: #{tpu_custom_call.1} parent=0
    _
  %s6 = ssub.s32 1, %s4
  %s7 = scalar_select 0, %s6, %s4
  $region1: #{tpu_custom_call.1} parent=0
    #allocation2 [shape = 'u8[512]{0}', space=vmem, size = 0x400, scoped, tag = 'output window, operand 0, single buffered']
    #allocation3 [shape = 's32[1]{0}', space=sflag, size = 0x4, scoped, tag = 'scoped memory for tpu_custom_call.1']
    %8 = vsyncpa [#allocation3], 0
    // Predicated region
    $region2: #{tpu_custom_call.1} parent=1 // pred_check
      _
    $region3: #{tpu_custom_call.1} parent=1 // pred_check_branch
      %10 = sbr.rel (0) target = $region5
    $region4: #{tpu_custom_call.1} parent=1 // pred_region
      _
    $region5: #{tpu_custom_call.1} parent=1 // pred_fallthru
      _
    // Predicated region
    $region6: #{tpu_custom_call.1} parent=1 // pred_check
      _
    $region7: #{tpu_custom_call.1} parent=1 // pred_check_branch
      %12 = sbr.rel (0) target = $region9
    $region8: #{tpu_custom_call.1} parent=1 // pred_region
      _
    $region9: #{tpu_custom_call.1} parent=1 // pred_fallthru
      _
    // Predicated region
    $region10: #{tpu_custom_call.1} parent=1 // pred_check
      _
    $region11: #{tpu_custom_call.1} parent=1 // pred_check_branch
      %14 = sbr.rel (0) target = $region13
    $region12: #{tpu_custom_call.1} parent=1 // pred_region
      _
    $region13: #{tpu_custom_call.1} parent=1 // pred_fallthru
      _
    %v15 = vld [vmem:[%s0] sm:$0x1]
    %v16 = vld [vmem:[%s0 + $0x1] sm:$0x1]
    %v17 = vlaneseq
    %v18 = vshrl.u32 %v17, 7
    %v19 = vadd.s32 %v18, 8
    %v20 = vadd.s32 %v18, 16
    %v21 = vlaneseq
    %v22 = vshrl.u32 %v21, 7
    %v23 = vsub.s32 0, %v22
    %v24 = vrot.slane %v15, %v23
    %vm25 = vcmp.eq.s32.totalorder %v18, %v24
    %vm26 = vcmp.eq.s32.totalorder %v19, %v24
    %vm27 = vcmp.eq.s32.totalorder %v20, %v24
    %v28 = vlaneseq
    %v29 = vshrl.u32 %v28, 7
    %v30 = vsub.s32 0, %v29
    %v31 = vrot.slane %v16, %v30
    %vm32 = vcmp.eq.s32.totalorder %v18, %v31
    %vm33 = vcmp.eq.s32.totalorder %v19, %v31
    %vm34 = vcmp.eq.s32.totalorder %v20, %v31
    %vm35 = vmor %vm25, %vm32
    %vm36 = vmor %vm26, %vm33
    %vm37 = vmor %vm27, %vm34
    %v38 = vsel %vm35, 1, 0
    %v39 = vsel %vm36, 1, 0
    %v40 = vsel %vm37, 1, 0
    %v41 = vcvt.s32.f32 %v38
    %v42 = vcvt.s32.f32 %v39
    %v43 = vcvt.s32.f32 %v40
    %v44 = vld [vmem:[%s1] sm:$0xff]
    %v45 = vld [vmem:[%s1 + $0x8] sm:$0xff]
    %v46 = vld [vmem:[%s1 + $0x10] sm:$0xff]
    %v47 = vld [vmem:[%s1 + $0x18] sm:$0xff]
    %v48 = vld [vmem:[%s2] sm:$0xff]
    %v49 = vld [vmem:[%s2 + $0x8] sm:$0xff]
    %v50 = vld [vmem:[%s2 + $0x10] sm:$0xff]
    %v51 = vld [vmem:[%s2 + $0x18] sm:$0x1]
    %v52 = vld [vmem:[%s2 + $0x18] sm:$0xff]
    %v53 = vld [vmem:[%s2] sm:$0x1]
    %55 = vset.pattern.permute.xlu0 32
    %56 = vperm.xlu0 %55, %v48
    %v57 = vpop.permute.xlu0 %56
    %60 = vset.pattern.permute.xlu0 32
    %61 = vperm.xlu0 %60, %v49
    %v62 = vpop.permute.xlu0 %61
    %65 = vset.pattern.permute.xlu0 32
    %66 = vperm.xlu0 %65, %v50
    %v67 = vpop.permute.xlu0 %66
    %70 = vset.pattern.permute.xlu0 32
    %71 = vperm.xlu0 %70, %v52
    %v72 = vpop.permute.xlu0 %71
    %vm74 = vcmask 195584
    %v76 = vsel %vm74, %v44, 0
    %v79 = vsel %vm74, %v45, 0
    %v82 = vsel %vm74, %v46, 0
    %v85 = vsel %vm74, %v47, 0
    %87 = vmatprep.subr.mxu0 0.0
    %88 = vmatpush1.msra.mxu0 %v41
    %89 = vmatprep.subr.mxu0 0.0
    %90 = vmatpush1.msra.mxu0 %v42
    %91 = vmatprep.subr.mxu0 0.0
    %92 = vmatpush1.msra.mxu0 %v43
    %93 = vmatprep.subr.mxu0 0.0
    %94 = vmatpush1.msra.mxu0 0.0
    %95 = vmatprep.subr.mxu0 0.0
    %96 = vmatpush1.msra.mxu0 0.0
    %97 = vmatprep.subr.mxu0 0.0
    %98 = vmatpush1.msra.mxu0 0.0
    %99 = vmatprep.subr.mxu0 0.0
    %100 = vmatpush1.msra.mxu0 0.0
    %101 = vmatprep.subr.mxu0 0.0
    %102 = vmatpush1.msra.mxu0 0.0
    %103 = vmatprep.subr.mxu0 0.0
    %104 = vmatpush1.msra.mxu0 0.0
    %105 = vmatprep.subr.mxu0 0.0
    %106 = vmatpush1.msra.mxu0 0.0
    %107 = vmatprep.subr.mxu0 0.0
    %108 = vmatpush1.msra.mxu0 0.0
    %109 = vmatprep.subr.mxu0 0.0
    %110 = vmatpush1.msra.mxu0 0.0
    %111 = vmatprep.subr.mxu0 0.0
    %112 = vmatpush1.msra.mxu0 0.0
    %113 = vmatprep.subr.mxu0 0.0
    %114 = vmatpush1.msra.mxu0 0.0
    %115 = vmatprep.subr.mxu0 0.0
    %116 = vmatpush1.msra.mxu0 0.0
    %117 = vmatprep.subr.mxu0 0.0
    %118 = vmatpush1.msra.mxu0 0.0
    %119 = vmatprep.subr.mxu0 0.0
    %120 = vmatpush1.msra.mxu0 0.0
    %121 = vmatprep.subr.mxu0 0.0
    %122 = vmatpush1.msra.mxu0 0.0
    %123 = vmatprep.subr.mxu0 0.0
    %124 = vmatpush1.msra.mxu0 0.0
    %125 = vmatprep.subr.mxu0 0.0
    %126 = vmatpush1.msra.mxu0 0.0
    %127 = vmatprep.subr.mxu0 0.0
    %128 = vmatpush1.msra.mxu0 0.0
    %129 = vmatprep.subr.mxu0 0.0
    %130 = vmatpush1.msra.mxu0 0.0
    %131 = vmatprep.subr.mxu0 0.0
    %132 = vmatpush1.msra.mxu0 0.0
    %133 = vmatprep.subr.mxu0 0.0
    %134 = vmatpush1.msra.mxu0 0.0
    %135 = vmatprep.subr.mxu0 0.0
    %136 = vmatpush1.msra.mxu0 0.0
    %137 = vmatprep.subr.mxu0 0.0
    %138 = vmatpush1.msra.mxu0 0.0
    %139 = vmatprep.subr.mxu0 0.0
    %140 = vmatpush1.msra.mxu0 0.0
    %141 = vmatprep.subr.mxu0 0.0
    %142 = vmatpush1.msra.mxu0 0.0
    %143 = vmatprep.subr.mxu0 0.0
    %144 = vmatpush1.msra.mxu0 0.0
    %145 = vmatprep.subr.mxu0 0.0
    %146 = vmatpush1.msra.mxu0 0.0
    %147 = vmatprep.subr.mxu0 0.0
    %148 = vmatpush1.msra.mxu0 0.0
    %149 = vmatprep.subr.mxu0 0.0
    %150 = vmatpush1.msra.mxu0 0.0
    %151 = vmatprep.mubr.f32.mxu0 0.0
    %152 = vmatmul.mubr.f32.gmra.mrb[0].mxu0 %v76
    %v153 = vpop.f32.mrb[0].mxu0
    %v154 = vadd.f32 %v57, %v153
    %v155 = vpop.f32.mrb[0].mxu0
    %156 = vmatprep.mubr.f32.mxu0 0.0
    %157 = vmatmul.mubr.f32.gmra.mrb[0].mxu0 %v79
    %v158 = vpop.f32.mrb[0].mxu0
    %v159 = vadd.f32 %v62, %v158
    %v160 = vpop.f32.mrb[0].mxu0
    %161 = vmatprep.mubr.f32.mxu0 0.0
    %162 = vmatmul.mubr.f32.gmra.mrb[0].mxu0 %v82
    %v163 = vpop.f32.mrb[0].mxu0
    %v164 = vadd.f32 %v67, %v163
    %v165 = vpop.f32.mrb[0].mxu0
    %166 = vmatprep.mubr.f32.mxu0 0.0
    %167 = vmatmul.mubr.f32.gmra.mrb[0].mxu0 %v85
    %v168 = vpop.f32.mrb[0].mxu0
    %v169 = vadd.f32 %v72, %v168
    %v170 = vpop.f32.mrb[0].mxu0
    %171 = vdwg.mxu0
    %v172 = vmax.f32 %v154, 0.0
    %v173 = vmax.f32 %v159, 0.0
    %v174 = vmax.f32 %v164, 0.0
    %v175 = vmax.f32 %v169, 0.0
    %176 = vset.pattern.permute.xlu0 33
    %177 = vperm.xlu0 %176, %v48
    %v178 = vpop.permute.xlu0 %177
    %180 = vset.pattern.permute.xlu0 33
    %181 = vperm.xlu0 %180, %v49
    %v182 = vpop.permute.xlu0 %181
    %vm184 = vcmask 261120
    %v185 = vsel %vm184, %v48, 0
    %v187 = vsel %vm184, %v49, 0
    %189 = vmatprep.subr.mxu0 0.0
    %190 = vmatpush1.msra.mxu0 %v172
    %191 = vmatprep.subr.mxu0 0.0
    %192 = vmatpush1.msra.mxu0 %v173
    %193 = vmatprep.subr.mxu0 0.0
    %194 = vmatpush1.msra.mxu0 %v174
    %195 = vmatprep.subr.mxu0 0.0
    %196 = vmatpush1.msra.mxu0 %v175
    %197 = vmatprep.subr.mxu0 0.0
    %198 = vmatpush1.msra.mxu0 0.0
    %199 = vmatprep.subr.mxu0 0.0
    %200 = vmatpush1.msra.mxu0 0.0
    %201 = vmatprep.subr.mxu0 0.0
    %202 = vmatpush1.msra.mxu0 0.0
    %203 = vmatprep.subr.mxu0 0.0
    %204 = vmatpush1.msra.mxu0 0.0
    %205 = vmatprep.subr.mxu0 0.0
    %206 = vmatpush1.msra.mxu0 0.0
    %207 = vmatprep.subr.mxu0 0.0
    %208 = vmatpush1.msra.mxu0 0.0
    %209 = vmatprep.subr.mxu0 0.0
    %210 = vmatpush1.msra.mxu0 0.0
    %211 = vmatprep.subr.mxu0 0.0
    %212 = vmatpush1.msra.mxu0 0.0
    %213 = vmatprep.subr.mxu0 0.0
    %214 = vmatpush1.msra.mxu0 0.0
    %215 = vmatprep.subr.mxu0 0.0
    %216 = vmatpush1.msra.mxu0 0.0
    %217 = vmatprep.subr.mxu0 0.0
    %218 = vmatpush1.msra.mxu0 0.0
    %219 = vmatprep.subr.mxu0 0.0
    %220 = vmatpush1.msra.mxu0 0.0
    %221 = vmatprep.subr.mxu0 0.0
    %222 = vmatpush1.msra.mxu0 0.0
    %223 = vmatprep.subr.mxu0 0.0
    %224 = vmatpush1.msra.mxu0 0.0
    %225 = vmatprep.subr.mxu0 0.0
    %226 = vmatpush1.msra.mxu0 0.0
    %227 = vmatprep.subr.mxu0 0.0
    %228 = vmatpush1.msra.mxu0 0.0
    %229 = vmatprep.subr.mxu0 0.0
    %230 = vmatpush1.msra.mxu0 0.0
    %231 = vmatprep.subr.mxu0 0.0
    %232 = vmatpush1.msra.mxu0 0.0
    %233 = vmatprep.subr.mxu0 0.0
    %234 = vmatpush1.msra.mxu0 0.0
    %235 = vmatprep.subr.mxu0 0.0
    %236 = vmatpush1.msra.mxu0 0.0
    %237 = vmatprep.subr.mxu0 0.0
    %238 = vmatpush1.msra.mxu0 0.0
    %239 = vmatprep.subr.mxu0 0.0
    %240 = vmatpush1.msra.mxu0 0.0
    %241 = vmatprep.subr.mxu0 0.0
    %242 = vmatpush1.msra.mxu0 0.0
    %243 = vmatprep.subr.mxu0 0.0
    %244 = vmatpush1.msra.mxu0 0.0
    %245 = vmatprep.subr.mxu0 0.0
    %246 = vmatpush1.msra.mxu0 0.0
    %247 = vmatprep.subr.mxu0 0.0
    %248 = vmatpush1.msra.mxu0 0.0
    %249 = vmatprep.subr.mxu0 0.0
    %250 = vmatpush1.msra.mxu0 0.0
    %251 = vmatprep.subr.mxu0 0.0
    %252 = vmatpush1.msra.mxu0 0.0
    %253 = vmatprep.mubr.f32.mxu0 0.0
    %254 = vmatmul.mubr.f32.gmra.mrb[0].mxu0 %v185
    %v255 = vpop.f32.mrb[0].mxu0
    %v256 = vadd.f32 %v178, %v255
    %v257 = vpop.f32.mrb[0].mxu0
    %258 = vmatprep.mubr.f32.mxu0 0.0
    %259 = vmatmul.mubr.f32.gmra.mrb[0].mxu0 %v187
    %v260 = vpop.f32.mrb[0].mxu0
    %v261 = vadd.f32 %v182, %v260
    %v262 = vpop.f32.mrb[0].mxu0
    %263 = vdwg.mxu0
    %v264 = vmax.f32 %v256, 0.0
    %v265 = vmax.f32 %v261, 0.0
    %266 = vset.pattern.permute.xlu0 34
    %267 = vperm.xlu0 %266, %v48
    %v268 = vpop.permute.xlu0 %267
    %vm270 = vcmask 130048
    %v271 = vsel %vm270, %v50, 0
    %273 = vmatprep.subr.mxu0 0.0
    %274 = vmatpush1.msra.mxu0 %v264
    %275 = vmatprep.subr.mxu0 0.0
    %276 = vmatpush1.msra.mxu0 %v265
    %277 = vmatprep.subr.mxu0 0.0
    %278 = vmatpush1.msra.mxu0 0.0
    %279 = vmatprep.subr.mxu0 0.0
    %280 = vmatpush1.msra.mxu0 0.0
    %281 = vmatprep.subr.mxu0 0.0
    %282 = vmatpush1.msra.mxu0 0.0
    %283 = vmatprep.subr.mxu0 0.0
    %284 = vmatpush1.msra.mxu0 0.0
    %285 = vmatprep.subr.mxu0 0.0
    %286 = vmatpush1.msra.mxu0 0.0
    %287 = vmatprep.subr.mxu0 0.0
    %288 = vmatpush1.msra.mxu0 0.0
    %289 = vmatprep.subr.mxu0 0.0
    %290 = vmatpush1.msra.mxu0 0.0
    %291 = vmatprep.subr.mxu0 0.0
    %292 = vmatpush1.msra.mxu0 0.0
    %293 = vmatprep.subr.mxu0 0.0
    %294 = vmatpush1.msra.mxu0 0.0
    %295 = vmatprep.subr.mxu0 0.0
    %296 = vmatpush1.msra.mxu0 0.0
    %297 = vmatprep.subr.mxu0 0.0
    %298 = vmatpush1.msra.mxu0 0.0
    %299 = vmatprep.subr.mxu0 0.0
    %300 = vmatpush1.msra.mxu0 0.0
    %301 = vmatprep.subr.mxu0 0.0
    %302 = vmatpush1.msra.mxu0 0.0
    %303 = vmatprep.subr.mxu0 0.0
    %304 = vmatpush1.msra.mxu0 0.0
    %305 = vmatprep.subr.mxu0 0.0
    %306 = vmatpush1.msra.mxu0 0.0
    %307 = vmatprep.subr.mxu0 0.0
    %308 = vmatpush1.msra.mxu0 0.0
    %309 = vmatprep.subr.mxu0 0.0
    %310 = vmatpush1.msra.mxu0 0.0
    %311 = vmatprep.subr.mxu0 0.0
    %312 = vmatpush1.msra.mxu0 0.0
    %313 = vmatprep.subr.mxu0 0.0
    %314 = vmatpush1.msra.mxu0 0.0
    %315 = vmatprep.subr.mxu0 0.0
    %316 = vmatpush1.msra.mxu0 0.0
    %317 = vmatprep.subr.mxu0 0.0
    %318 = vmatpush1.msra.mxu0 0.0
    %319 = vmatprep.subr.mxu0 0.0
    %320 = vmatpush1.msra.mxu0 0.0
    %321 = vmatprep.subr.mxu0 0.0
    %322 = vmatpush1.msra.mxu0 0.0
    %323 = vmatprep.subr.mxu0 0.0
    %324 = vmatpush1.msra.mxu0 0.0
    %325 = vmatprep.subr.mxu0 0.0
    %326 = vmatpush1.msra.mxu0 0.0
    %327 = vmatprep.subr.mxu0 0.0
    %328 = vmatpush1.msra.mxu0 0.0
    %329 = vmatprep.subr.mxu0 0.0
    %330 = vmatpush1.msra.mxu0 0.0
    %331 = vmatprep.subr.mxu0 0.0
    %332 = vmatpush1.msra.mxu0 0.0
    %333 = vmatprep.subr.mxu0 0.0
    %334 = vmatpush1.msra.mxu0 0.0
    %335 = vmatprep.subr.mxu0 0.0
    %336 = vmatpush1.msra.mxu0 0.0
    %337 = vmatprep.mubr.f32.mxu0 0.0
    %338 = vmatmul.mubr.f32.gmra.mrb[0].mxu0 %v271
    %v339 = vpop.f32.mrb[0].mxu0
    %v340 = vadd.f32 %v268, %v339
    %v341 = vpop.f32.mrb[0].mxu0
    %342 = vdwg.mxu0
    %v343 = vmax.f32 %v340, 0.0
    %345 = vset.pattern.permute.xlu0 35
    %346 = vperm.xlu0 %345, %v53
    %v347 = vpop.permute.xlu0 %346
    %vm349 = vcmask 64512
    %v351 = vsel %vm349, %v51, 0
    %353 = vmatprep.subr.mxu0 0.0
    %354 = vmatpush1.msra.mxu0 %v343
    %355 = vmatprep.subr.mxu0 0.0
    %356 = vmatpush1.msra.mxu0 0.0
    %357 = vmatprep.subr.mxu0 0.0
    %358 = vmatpush1.msra.mxu0 0.0
    %359 = vmatprep.subr.mxu0 0.0
    %360 = vmatpush1.msra.mxu0 0.0
    %361 = vmatprep.subr.mxu0 0.0
    %362 = vmatpush1.msra.mxu0 0.0
    %363 = vmatprep.subr.mxu0 0.0
    %364 = vmatpush1.msra.mxu0 0.0
    %365 = vmatprep.subr.mxu0 0.0
    %366 = vmatpush1.msra.mxu0 0.0
    %367 = vmatprep.subr.mxu0 0.0
    %368 = vmatpush1.msra.mxu0 0.0
    %369 = vmatprep.subr.mxu0 0.0
    %370 = vmatpush1.msra.mxu0 0.0
    %371 = vmatprep.subr.mxu0 0.0
    %372 = vmatpush1.msra.mxu0 0.0
    %373 = vmatprep.subr.mxu0 0.0
    %374 = vmatpush1.msra.mxu0 0.0
    %375 = vmatprep.subr.mxu0 0.0
    %376 = vmatpush1.msra.mxu0 0.0
    %377 = vmatprep.subr.mxu0 0.0
    %378 = vmatpush1.msra.mxu0 0.0
    %379 = vmatprep.subr.mxu0 0.0
    %380 = vmatpush1.msra.mxu0 0.0
    %381 = vmatprep.subr.mxu0 0.0
    %382 = vmatpush1.msra.mxu0 0.0
    %383 = vmatprep.subr.mxu0 0.0
    %384 = vmatpush1.msra.mxu0 0.0
    %385 = vmatprep.subr.mxu0 0.0
    %386 = vmatpush1.msra.mxu0 0.0
    %387 = vmatprep.subr.mxu0 0.0
    %388 = vmatpush1.msra.mxu0 0.0
    %389 = vmatprep.subr.mxu0 0.0
    %390 = vmatpush1.msra.mxu0 0.0
    %391 = vmatprep.subr.mxu0 0.0
    %392 = vmatpush1.msra.mxu0 0.0
    %393 = vmatprep.subr.mxu0 0.0
    %394 = vmatpush1.msra.mxu0 0.0
    %395 = vmatprep.subr.mxu0 0.0
    %396 = vmatpush1.msra.mxu0 0.0
    %397 = vmatprep.subr.mxu0 0.0
    %398 = vmatpush1.msra.mxu0 0.0
    %399 = vmatprep.subr.mxu0 0.0
    %400 = vmatpush1.msra.mxu0 0.0
    %401 = vmatprep.subr.mxu0 0.0
    %402 = vmatpush1.msra.mxu0 0.0
    %403 = vmatprep.subr.mxu0 0.0
    %404 = vmatpush1.msra.mxu0 0.0
    %405 = vmatprep.subr.mxu0 0.0
    %406 = vmatpush1.msra.mxu0 0.0
    %407 = vmatprep.subr.mxu0 0.0
    %408 = vmatpush1.msra.mxu0 0.0
    %409 = vmatprep.subr.mxu0 0.0
    %410 = vmatpush1.msra.mxu0 0.0
    %411 = vmatprep.subr.mxu0 0.0
    %412 = vmatpush1.msra.mxu0 0.0
    %413 = vmatprep.subr.mxu0 0.0
    %414 = vmatpush1.msra.mxu0 0.0
    %415 = vmatprep.subr.mxu0 0.0
    %416 = vmatpush1.msra.mxu0 0.0
    %417 = vmatprep.mubr.f32.mxu0 0.0
    %418 = vmatmul.mubr.f32.gmra.mrb[0].mxu0 %v351
    %v419 = vpop.f32.mrb[0].mxu0
    %v420 = vadd.f32 %v347, %v419
    %v421 = vpop.f32.mrb[0].mxu0
    %422 = vdwg.mxu0
    %v423 = vxor.u32 %v420, 2147483648
    %v424 = vmul.f32 %v423, 1.442695
    %v425 = vpow.pop %v424
    %v426 = vadd.f32 %v425, 1.0
    %v427 = vrcp.pop %v426
    %v428 = vmul.f32 1.0, %v427
    %429 = vst [vmem:[#allocation2] sm:$0x1] %v428
    // Predicated region
    $region14: #{tpu_custom_call.1} parent=1 // pred_check
      _
    $region15: #{tpu_custom_call.1} parent=1 // pred_check_branch
      %431 = sbr.rel (0) target = $region17
    $region16: #{tpu_custom_call.1} parent=1 // pred_region
      %s433 = ssub.s32 16, 16
      %434 = vsyncadd [#allocation3], %s433
      %s436 = sshll.u32 [#allocation2], 4
      %s437 = int_to_ptr.vmem [resolvable:$true] %s436
      %439 = dma.vmem_to_hbm [thread:$0]  %s437, 16, %s3, [#allocation3]
    $region17: #{tpu_custom_call.1} parent=1 // pred_fallthru
      _
    // Predicated region
    $region18: #{tpu_custom_call.1} parent=1 // pred_check
      _
    $region19: #{tpu_custom_call.1} parent=1 // pred_check_branch
      %441 = sbr.rel (0) target = $region21
    $region20: #{tpu_custom_call.1} parent=1 // pred_region
      %442 = dma.done [#allocation3], 16
    $region21: #{tpu_custom_call.1} parent=1 // pred_fallthru
      _
    %443 = vsyncpa [#allocation3], 1

</llo_original>
